<compile_context>
chip_gen: v5e
topology: v5e:2x2
jax: 0.10.0
libtpu: 0.0.40
codegen_flags: <defaults>
</compile_context>

<pallas_src>
import functools

import jax
import jax.numpy as jnp
from jax import lax
from jax.experimental import pallas as pl
from jax.experimental.pallas import tpu as pltpu


def _same_conv_layer_kernel(x_ref, w_ref, b_ref, sel_ref, out_ref, xc_ref, *,
                            block_n, H, W, Hout, Wout):
    """One batch block per grid step (transposed layout: channels on sublanes).

    x_ref:   (block_n, Cin, H*W)     NCHW images, spatial flattened
    w_ref:   (Cout, 9*Cin)           conv weights, column t = (kh*3 + kw)*Cin + ci
    b_ref:   (Cout, 1)               conv bias
    sel_ref: (Msel, Hp*Wp)           0/1 gather: sel[m, p] = (m == 2*(p//Wp)*W + 2*(p%Wp))
    out_ref: (block_n, Cout, Hp*Wp)  pooled output, spatial flattened
    xc_ref:  (9*Cin, block_n*H*W)    im2col scratch: xc[t, b*H*W + m] = x[b, ci, m + kh*W + kw]
    """
    Cin = x_ref.shape[1]
    Mpad = H * W                        # per-image lane stride inside the scratch
    M = (Hout - 1) * W + Wout           # flat conv extent actually needed per image
    Msel = sel_ref.shape[0]
    T = block_n * Mpad

    # ---- im2col: one flat lane-shifted (Cin, M) copy per (kh, kw) tap per image ----
    for b in range(block_n):
        for kh in range(3):
            for kw in range(3):
                t0 = (kh * 3 + kw) * Cin
                s = kh * W + kw
                xc_ref[t0:t0 + Cin, b * Mpad:b * Mpad + M] = x_ref[b, :, s:s + M]

    w = w_ref[...]                      # (Cout, 9*Cin)
    sel = sel_ref[...]                  # (Msel, Hp*Wp)
    bias = b_ref[...]                   # (Cout, 1), broadcasts over lanes

    # ---- conv: a single K = 9*Cin matmul over the whole batch block ----
    conv = jnp.dot(w, xc_ref[...], preferred_element_type=jnp.float32)    # (Cout, T)

    # ---- 2x2 max-pool ----
    # vertical 2-max: conv row h vs h+1 is a lane shift of W
    vmax = jnp.maximum(conv[:, :T - W], conv[:, W:])                      # (Cout, T-W)
    # horizontal 2-max: column w vs w+1 is a lane shift of 1
    hmax = jnp.maximum(vmax[:, :T - W - 1], vmax[:, 1:])                  # (Cout, T-W-1)

    # Gather the stride-2 window corners with one exact 0/1 selector matmul per image.
    # All selected columns only touch valid conv positions, so unwritten scratch lanes and
    # wrap taps never reach the result.  Bias + ReLU after the max is exact.
    for b in range(block_n):
        hb = hmax[:, b * Mpad:b * Mpad + Msel]                            # (Cout, Msel)
        pooled = jnp.dot(hb, sel, preferred_element_type=jnp.float32)     # (Cout, Hp*Wp)
        out_ref[b] = jnp.maximum(pooled + bias, 0.0).astype(out_ref.dtype)


def _pick_batch_block(n, max_block=8):
    """Pick (block_n, padded_n): large blocks to amortize per-step overhead while keeping
    >= 2 parallel grid steps when n >= 2 (both v7x TensorCores get work).  n is padded up so
    any batch size works (no degenerate 1-image steps for odd/prime N)."""
    if n <= 1:
        return 1, 1
    steps = max(2, -(-n // max_block))
    block = -(-n // steps)
    return block, steps * block


def _pool_selector(Hp, Wp, W, Msel):
    """Exact 0/1 gather matrix: column p picks flat conv position 2*(p//Wp)*W + 2*(p%Wp)."""
    p = jnp.arange(Hp * Wp)
    tgt = 2 * (p // Wp) * W + 2 * (p % Wp)
    m = jnp.arange(Msel)
    return (m[:, None] == tgt[None, :]).astype(jnp.float32)


def same_conv_layer(x_nchw, weight_oihw, bias):
    """Forward pass of _Same_Conv_Layer. Input NCHW, weight OIHW, output NCHW (no transposes)."""
    N, Cin, H, W = x_nchw.shape
    Cout = weight_oihw.shape[0]
    Hout, Wout = H - 2, W - 2            # kernel_size=3, stride=1, no padding
    Hp, Wp = Hout // 2, Wout // 2        # MaxPool2d(2), default stride 2, floor mode
    P = Hp * Wp
    Mpad = H * W
    Msel = 2 * (Hp - 1) * W + 2 * (Wp - 1) + 1   # last flat conv position the pool gather reads

    block_n, n_pad = _pick_batch_block(N)
    grid = (n_pad // block_n,)

    if n_pad != N:
        pad = jnp.zeros((n_pad - N, Cin, H, W), x_nchw.dtype)
        x_nchw = jnp.concatenate([x_nchw, pad], axis=0)
    x = x_nchw.reshape(n_pad, Cin, Mpad)                                 # free metadata reshape

    # OIHW -> (Cout, KH, KW, Cin) -> (Cout, 9*Cin); t = (kh*3 + kw)*Cin + ci
    w2 = jnp.transpose(weight_oihw, (0, 2, 3, 1)).reshape(Cout, 9 * Cin)
    b2 = bias.reshape(Cout, 1).astype(jnp.float32)
    sel = _pool_selector(Hp, Wp, W, Msel)

    kernel = functools.partial(
        _same_conv_layer_kernel,
        block_n=block_n, H=H, W=W, Hout=Hout, Wout=Wout)

    cost = pl.CostEstimate(
        flops=2 * Cout * 9 * Cin * n_pad * Mpad + 2 * n_pad * Cout * Msel * P,
        transcendentals=0,
        bytes_accessed=4 * (n_pad * Cin * Mpad + Cout * 9 * Cin + Cout
                            + Msel * P + n_pad * Cout * P))

    out = pl.pallas_call(
        kernel,
        out_shape=jax.ShapeDtypeStruct((n_pad, Cout, P), x.dtype),
        grid_spec=pltpu.PrefetchScalarGridSpec(
            num_scalar_prefetch=0,
            grid=grid,
            in_specs=[
                pl.BlockSpec((block_n, Cin, Mpad), lambda n: (n, 0, 0)),
                pl.BlockSpec((Cout, 9 * Cin), lambda n: (0, 0)),
                pl.BlockSpec((Cout, 1), lambda n: (0, 0)),
                pl.BlockSpec((Msel, P), lambda n: (0, 0)),
            ],
            out_specs=pl.BlockSpec((block_n, Cout, P), lambda n: (n, 0, 0)),
            scratch_shapes=[pltpu.VMEM((9 * Cin, block_n * Mpad), x.dtype)],
        ),
        compiler_params=pltpu.CompilerParams(
            dimension_semantics=("parallel",),
            vmem_limit_bytes=32 * 1024 * 1024,
        ),
        cost_estimate=cost,
    )(x, w2, b2, sel)

    if n_pad != N:
        out = out[:N]
    return out.reshape(N, Cout, Hp, Wp)   # free row-major metadata reshape


def _reference(x_nchw, weight_oihw, bias):
    """Pure-JAX reference matching torch semantics (for correctness check)."""
    conv = lax.conv_general_dilated(
        x_nchw, weight_oihw,
        window_strides=(1, 1), padding="VALID",
        dimension_numbers=("NCHW", "OIHW", "NCHW"),
        precision=lax.Precision.HIGHEST,
    ) + bias.reshape(1, -1, 1, 1)
    relu = jnp.maximum(conv, 0.0)
    return lax.reduce_window(
        relu, -jnp.inf, lax.max,
        window_dimensions=(1, 1, 2, 2), window_strides=(1, 1, 2, 2), padding="VALID",
    )


if __name__ == "__main__":
    key = jax.random.PRNGKey(0)
    kx, kw, kb = jax.random.split(key, 3)

    # batch=2, in_channels=4, out_channels=8, spatial 16x16 -> conv 14x14 -> pool 7x7.
    N, Cin, Cout, H, W = 2, 4, 8, 16, 16

    x = jax.random.normal(kx, (N, Cin, H, W), dtype=jnp.float32)
    weight = 0.1 * jax.random.normal(kw, (Cout, Cin, 3, 3), dtype=jnp.float32)
    bias = 0.1 * jax.random.normal(kb, (Cout,), dtype=jnp.float32)

    out = jax.block_until_ready(same_conv_layer(x, weight, bias))
    ref = _reference(x, weight, bias)

    assert out.shape == (N, Cout, (H - 2) // 2, (W - 2) // 2), out.shape
    max_err = float(jnp.max(jnp.abs(out - ref)))
    assert jnp.allclose(out, ref, atol=1e-4, rtol=1e-4), max_err

    print("KERNEL_OK")
</pallas_src>

<mosaic_0001>
module attributes {stable_mosaic.version = 11 : i64} {
  func.func @_same_conv_layer_kernel(%arg0: i32, %arg1: memref<1x4x256xf32, #tpu.memory_space<vmem>>, %arg2: memref<8x36xf32, #tpu.memory_space<vmem>>, %arg3: memref<8x1xf32, #tpu.memory_space<vmem>>, %arg4: memref<205x49xf32, #tpu.memory_space<vmem>>, %arg5: memref<1x8x49xf32, #tpu.memory_space<vmem>>, %arg6: memref<36x256xf32, #tpu.memory_space<vmem>>) attributes {dimension_semantics = [#tpu.dimension_semantics<parallel>], iteration_bounds = array<i64: 2>, scalar_prefetch = 0 : i64, scratch_operands = 1 : i64, tpu.core_type = #tpu.core_type<tc>, window_params = [{transform_indices = @transform_0, window_bounds = array<i64: 1, 4, 256>}, {pipeline_mode = #tpu.pipeline_mode<synchronous>, transform_indices = @transform_1, window_bounds = array<i64: 8, 36>}, {pipeline_mode = #tpu.pipeline_mode<synchronous>, transform_indices = @transform_2, window_bounds = array<i64: 8, 1>}, {pipeline_mode = #tpu.pipeline_mode<synchronous>, transform_indices = @transform_3, window_bounds = array<i64: 205, 49>}, {transform_indices = @transform_4, window_bounds = array<i64: 1, 8, 49>}]} {
    %c0 = arith.constant 0 : index
    %c0_0 = arith.constant 0 : index
    %c0_1 = arith.constant 0 : index
    %0 = vector.load %arg1[%c0, %c0_0, %c0_1] : memref<1x4x256xf32, #tpu.memory_space<vmem>>, vector<1x4x222xf32>
    %1 = vector.shape_cast %0 : vector<1x4x222xf32> to vector<4x222xf32>
    %c0_2 = arith.constant 0 : index
    %c0_3 = arith.constant 0 : index
    %2 = vector.load %arg6[%c0_2, %c0_3] : memref<36x256xf32, #tpu.memory_space<vmem>>, vector<4x222xf32>
    tpu.vector_store %arg6[%c0_2, %c0_3], %1 {strides = array<i32>} : memref<36x256xf32, #tpu.memory_space<vmem>>, vector<4x222xf32>,
    %c0_4 = arith.constant 0 : index
    %c0_5 = arith.constant 0 : index
    %c1 = arith.constant 1 : index
    %3 = vector.load %arg1[%c0_4, %c0_5, %c1] : memref<1x4x256xf32, #tpu.memory_space<vmem>>, vector<1x4x222xf32>
    %4 = vector.shape_cast %3 : vector<1x4x222xf32> to vector<4x222xf32>
    %c4 = arith.constant 4 : index
    %c0_6 = arith.constant 0 : index
    %5 = vector.load %arg6[%c4, %c0_6] : memref<36x256xf32, #tpu.memory_space<vmem>>, vector<4x222xf32>
    tpu.vector_store %arg6[%c4, %c0_6], %4 {strides = array<i32>} : memref<36x256xf32, #tpu.memory_space<vmem>>, vector<4x222xf32>,
    %c0_7 = arith.constant 0 : index
    %c0_8 = arith.constant 0 : index
    %c2 = arith.constant 2 : index
    %6 = vector.load %arg1[%c0_7, %c0_8, %c2] : memref<1x4x256xf32, #tpu.memory_space<vmem>>, vector<1x4x222xf32>
    %7 = vector.shape_cast %6 : vector<1x4x222xf32> to vector<4x222xf32>
    %c8 = arith.constant 8 : index
    %c0_9 = arith.constant 0 : index
    %8 = vector.load %arg6[%c8, %c0_9] : memref<36x256xf32, #tpu.memory_space<vmem>>, vector<4x222xf32>
    tpu.vector_store %arg6[%c8, %c0_9], %7 {strides = array<i32>} : memref<36x256xf32, #tpu.memory_space<vmem>>, vector<4x222xf32>,
    %c0_10 = arith.constant 0 : index
    %c0_11 = arith.constant 0 : index
    %c16 = arith.constant 16 : index
    %9 = vector.load %arg1[%c0_10, %c0_11, %c16] : memref<1x4x256xf32, #tpu.memory_space<vmem>>, vector<1x4x222xf32>
    %10 = vector.shape_cast %9 : vector<1x4x222xf32> to vector<4x222xf32>
    %c12 = arith.constant 12 : index
    %c0_12 = arith.constant 0 : index
    %11 = vector.load %arg6[%c12, %c0_12] : memref<36x256xf32, #tpu.memory_space<vmem>>, vector<4x222xf32>
    tpu.vector_store %arg6[%c12, %c0_12], %10 {strides = array<i32>} : memref<36x256xf32, #tpu.memory_space<vmem>>, vector<4x222xf32>,
    %c0_13 = arith.constant 0 : index
    %c0_14 = arith.constant 0 : index
    %c17 = arith.constant 17 : index
    %12 = vector.load %arg1[%c0_13, %c0_14, %c17] : memref<1x4x256xf32, #tpu.memory_space<vmem>>, vector<1x4x222xf32>
    %13 = vector.shape_cast %12 : vector<1x4x222xf32> to vector<4x222xf32>
    %c16_15 = arith.constant 16 : index
    %c0_16 = arith.constant 0 : index
    %14 = vector.load %arg6[%c16_15, %c0_16] : memref<36x256xf32, #tpu.memory_space<vmem>>, vector<4x222xf32>
    tpu.vector_store %arg6[%c16_15, %c0_16], %13 {strides = array<i32>} : memref<36x256xf32, #tpu.memory_space<vmem>>, vector<4x222xf32>,
    %c0_17 = arith.constant 0 : index
    %c0_18 = arith.constant 0 : index
    %c18 = arith.constant 18 : index
    %15 = vector.load %arg1[%c0_17, %c0_18, %c18] : memref<1x4x256xf32, #tpu.memory_space<vmem>>, vector<1x4x222xf32>
    %16 = vector.shape_cast %15 : vector<1x4x222xf32> to vector<4x222xf32>
    %c20 = arith.constant 20 : index
    %c0_19 = arith.constant 0 : index
    %17 = vector.load %arg6[%c20, %c0_19] : memref<36x256xf32, #tpu.memory_space<vmem>>, vector<4x222xf32>
    tpu.vector_store %arg6[%c20, %c0_19], %16 {strides = array<i32>} : memref<36x256xf32, #tpu.memory_space<vmem>>, vector<4x222xf32>,
    %c0_20 = arith.constant 0 : index
    %c0_21 = arith.constant 0 : index
    %c32 = arith.constant 32 : index
    %18 = vector.load %arg1[%c0_20, %c0_21, %c32] : memref<1x4x256xf32, #tpu.memory_space<vmem>>, vector<1x4x222xf32>
    %19 = vector.shape_cast %18 : vector<1x4x222xf32> to vector<4x222xf32>
    %c24 = arith.constant 24 : index
    %c0_22 = arith.constant 0 : index
    %20 = vector.load %arg6[%c24, %c0_22] : memref<36x256xf32, #tpu.memory_space<vmem>>, vector<4x222xf32>
    tpu.vector_store %arg6[%c24, %c0_22], %19 {strides = array<i32>} : memref<36x256xf32, #tpu.memory_space<vmem>>, vector<4x222xf32>,
    %c0_23 = arith.constant 0 : index
    %c0_24 = arith.constant 0 : index
    %c33 = arith.constant 33 : index
    %21 = vector.load %arg1[%c0_23, %c0_24, %c33] : memref<1x4x256xf32, #tpu.memory_space<vmem>>, vector<1x4x222xf32>
    %22 = vector.shape_cast %21 : vector<1x4x222xf32> to vector<4x222xf32>
    %c28 = arith.constant 28 : index
    %c0_25 = arith.constant 0 : index
    %23 = vector.load %arg6[%c28, %c0_25] : memref<36x256xf32, #tpu.memory_space<vmem>>, vector<4x222xf32>
    tpu.vector_store %arg6[%c28, %c0_25], %22 {strides = array<i32>} : memref<36x256xf32, #tpu.memory_space<vmem>>, vector<4x222xf32>,
    %c0_26 = arith.constant 0 : index
    %c0_27 = arith.constant 0 : index
    %c34 = arith.constant 34 : index
    %24 = vector.load %arg1[%c0_26, %c0_27, %c34] : memref<1x4x256xf32, #tpu.memory_space<vmem>>, vector<1x4x222xf32>
    %25 = vector.shape_cast %24 : vector<1x4x222xf32> to vector<4x222xf32>
    %c32_28 = arith.constant 32 : index
    %c0_29 = arith.constant 0 : index
    %26 = vector.load %arg6[%c32_28, %c0_29] : memref<36x256xf32, #tpu.memory_space<vmem>>, vector<4x222xf32>
    tpu.vector_store %arg6[%c32_28, %c0_29], %25 {strides = array<i32>} : memref<36x256xf32, #tpu.memory_space<vmem>>, vector<4x222xf32>,
    %c0_30 = arith.constant 0 : index
    %c0_31 = arith.constant 0 : index
    %27 = vector.load %arg2[%c0_30, %c0_31] : memref<8x36xf32, #tpu.memory_space<vmem>>, vector<8x36xf32>
    %c0_32 = arith.constant 0 : index
    %c0_33 = arith.constant 0 : index
    %28 = vector.load %arg4[%c0_32, %c0_33] : memref<205x49xf32, #tpu.memory_space<vmem>>, vector<205x49xf32>
    %c0_34 = arith.constant 0 : index
    %c0_35 = arith.constant 0 : index
    %29 = vector.load %arg3[%c0_34, %c0_35] : memref<8x1xf32, #tpu.memory_space<vmem>>, vector<8x1xf32>
    %c0_36 = arith.constant 0 : index
    %c0_37 = arith.constant 0 : index
    %30 = vector.load %arg6[%c0_36, %c0_37] : memref<36x256xf32, #tpu.memory_space<vmem>>, vector<36x256xf32>
    %cst = arith.constant dense<0.000000e+00> : vector<8x256xf32>
    %31 = tpu.matmul %27, %30, %cst {dimension_numbers = #tpu.dot_dimension_numbers<[1], [0], [0], [1], [0, 0, 1, 1], [], []>} : vector<8x36xf32>, vector<36x256xf32>, vector<8x256xf32> -> vector<8x256xf32>
    %32 = vector.extract_strided_slice %31 {offsets = [0, 0], sizes = [8, 240], strides = [1, 1]} : vector<8x256xf32> to vector<8x240xf32>
    %33 = vector.extract_strided_slice %31 {offsets = [0, 16], sizes = [8, 240], strides = [1, 1]} : vector<8x256xf32> to vector<8x240xf32>
    %34 = arith.maximumf %32, %33 : vector<8x240xf32>
    %35 = vector.extract_strided_slice %34 {offsets = [0, 0], sizes = [8, 239], strides = [1, 1]} : vector<8x240xf32> to vector<8x239xf32>
    %36 = vector.extract_strided_slice %34 {offsets = [0, 1], sizes = [8, 239], strides = [1, 1]} : vector<8x240xf32> to vector<8x239xf32>
    %37 = arith.maximumf %35, %36 : vector<8x239xf32>
    %38 = vector.extract_strided_slice %37 {offsets = [0, 0], sizes = [8, 205], strides = [1, 1]} : vector<8x239xf32> to vector<8x205xf32>
    %cst_38 = arith.constant dense<0.000000e+00> : vector<8x49xf32>
    %39 = tpu.matmul %38, %28, %cst_38 {dimension_numbers = #tpu.dot_dimension_numbers<[1], [0], [0], [1], [0, 0, 1, 1], [], []>} : vector<8x205xf32>, vector<205x49xf32>, vector<8x49xf32> -> vector<8x49xf32>
    %40 = vector.broadcast %29 : vector<8x1xf32> to vector<8x49xf32>
    %41 = arith.addf %39, %40 : vector<8x49xf32>
    %cst_39 = arith.constant 0.000000e+00 : f32
    %42 = vector.broadcast %cst_39 : f32 to vector<8x49xf32>
    %43 = arith.maximumf %41, %42 : vector<8x49xf32>
    %c0_40 = arith.constant 0 : index
    %c0_41 = arith.constant 0 : index
    %c0_42 = arith.constant 0 : index
    %44 = vector.load %arg5[%c0_40, %c0_41, %c0_42] : memref<1x8x49xf32, #tpu.memory_space<vmem>>, vector<1x8x49xf32>
    %45 = vector.shape_cast %44 : vector<1x8x49xf32> to vector<8x49xf32>
    %46 = vector.shape_cast %43 : vector<8x49xf32> to vector<1x8x49xf32>
    tpu.vector_store %arg5[%c0_40, %c0_41, %c0_42], %46 {strides = array<i32>} : memref<1x8x49xf32, #tpu.memory_space<vmem>>, vector<1x8x49xf32>,
    return
  }
  func.func @transform_0(%arg0: i32) -> (i32, i32, i32) {
    %c0_i32 = arith.constant 0 : i32
    %c0_i32_0 = arith.constant 0 : i32
    %c0_i32_1 = arith.constant 0 : i32
    return %arg0, %c0_i32, %c0_i32_0 : i32, i32, i32
  }
  func.func @transform_1(%arg0: i32) -> (i32, i32) {
    %c0_i32 = arith.constant 0 : i32
    %c0_i32_0 = arith.constant 0 : i32
    %c0_i32_1 = arith.constant 0 : i32
    return %c0_i32, %c0_i32_0 : i32, i32
  }
  func.func @transform_2(%arg0: i32) -> (i32, i32) {
    %c0_i32 = arith.constant 0 : i32
    %c0_i32_0 = arith.constant 0 : i32
    %c0_i32_1 = arith.constant 0 : i32
    return %c0_i32, %c0_i32_0 : i32, i32
  }
  func.func @transform_3(%arg0: i32) -> (i32, i32) {
    %c0_i32 = arith.constant 0 : i32
    %c0_i32_0 = arith.constant 0 : i32
    %c0_i32_1 = arith.constant 0 : i32
    return %c0_i32, %c0_i32_0 : i32, i32
  }
  func.func @transform_4(%arg0: i32) -> (i32, i32, i32) {
    %c0_i32 = arith.constant 0 : i32
    %c0_i32_0 = arith.constant 0 : i32
    %c0_i32_1 = arith.constant 0 : i32
    return %arg0, %c0_i32, %c0_i32_0 : i32, i32, i32
  }
}

</mosaic_0001>

<llo_original>
// kernel: tpu_custom_call.1
$region0: #{tpu_custom_call.1}
  #allocation0 [shape = 'u32[]', space=smem, size = 0x4, offset = 0x4, fixed_abs, tag = 'smem constant byte address 0x4 - core index']
  #allocation1 [shape = 'u32[72,128]{1,0:T(1,128)}', space=vmem, size = 0x9000, scoped, tag = 'internal scratch']
  #allocation2 [shape = 'f32[36,256]{1,0:T(8,128)}', space=vmem, size = 0xa000, scoped, tag = 'scratch operand']
  %s0 = inlined_call_operand.vmem [shape: f32[2,4,256], index: 0, kind: input, shape index: {}]
  %s1 = inlined_call_operand.vmem [shape: f32[8,36], index: 1, kind: input, shape index: {}]
  %s2 = inlined_call_operand.vmem [shape: f32[8,1], index: 2, kind: input, shape index: {}]
  %s3 = inlined_call_operand.vmem [shape: f32[205,49], index: 3, kind: input, shape index: {}]
  %s4 = inlined_call_operand.hbm [shape: f32[2,8,49], index: 4, kind: output, shape index: {}]
  %s5 = sld [smem:[#allocation0]]
  $region49: #{tpu_custom_call.1} parent=0
    _
  %s7 = ssub.s32 1, %s5
  %s8 = scalar_select 0, %s7, %s5
  $region1: #{tpu_custom_call.1} parent=0
    #allocation3 [shape = 'u8[8192]{0}', space=vmem, size = 0x2000, scoped, tag = 'output window, operand 0']
    #allocation4 [shape = 's32[2]{0}', space=sflag, size = 0x8, scoped, tag = 'scoped memory for tpu_custom_call.1']
    %9 = vsyncpa [#allocation4], 0
    %s10 = scalar_lea.sflag [#allocation4], 1
    %11 = vsyncpa %s10, 0
    loop: start=0, step=1, limit=4
    $region2: #{tpu_custom_call.1} parent=1 // loop_pre_header
      _
    $region3: #{tpu_custom_call.1} parent=1 // loop_header
      %s13 = sphi 0, %s17
      %p14 = scmp.ge.s32.totalorder %s13, 4
      %s23 = sphi 0, %s25
      %s26 = sphi 0, %s23
      %s27 = sphi 0, %s26
      %s43 = sphi 0, %s27
      %s47 = sphi 0, %s47
      %s49 = sphi 0, %s47
      %s50 = sphi 0, %s49
      %s64 = sphi 0, %s50
      %s68 = sphi 0, %s68
      %s70 = sphi 0, %s68
      %s71 = sphi 0, %s70
      %s85 = sphi 0, %s71
      %s89 = sphi 0, %s89
      %s91 = sphi 0, %s89
      %s92 = sphi 0, %s91
      %s106 = sphi 0, %s92
      %s112 = sphi 0, %s114
      %s115 = sphi 0, %s112
      %s116 = sphi 0, %s115
      %s132 = sphi 0, %s116
    $region4: #{tpu_custom_call.1} parent=1 // loop_header_branch
      %16 = sbr.rel (%p14) target = $region8
    $region5: #{tpu_custom_call.1} parent=1 // loop_body
      %s18 = ssub.s32 %s13, 1
      %s19 = ssub.s32 %s13, 2
      %s20 = sadd.s32 %s13, 1
      %s21 = ssub.s32 %s13, %s20
      %p22 = scmp.eq.s32.totalorder %s21, 0
      %s24 = sadd.s32 %s23, 1
      %s25 = scalar_select %p22, %s23, %s24
      %p28 = pneg %p22
      %p29 = scmp.eq.s32.totalorder %s13, 1
      %p30 = por %p28, %p29
      %p31 = scmp.ne.s32.totalorder %s23, %s26
      %p32 = scmp.eq.s32.totalorder %s13, 0
      %p33 = por %p31, %p32
      %p34 = scmp.ne.s32.totalorder %s23, %s26
      %p35 = scmp.eq.s32.totalorder %s18, 1
      %p36 = por %p34, %p35
      %p37 = scmp.ne.s32.totalorder %s26, %s27
      %p38 = scmp.eq.s32.totalorder %s18, 0
      %p39 = por %p37, %p38
      %p40 = scmp.ne.s32.totalorder %s26, %s27
      %p41 = scmp.eq.s32.totalorder %s19, 1
      %p42 = por %p40, %p41
      %p44 = scmp.ne.s32.totalorder %s27, %s43
      %p45 = scmp.eq.s32.totalorder %s19, 0
      %p46 = por %p44, %p45
      %s48 = sadd.s32 %s47, 1
      %p51 = scmp.eq.s32.totalorder %s13, 1
      %p52 = scmp.ne.s32.totalorder %s47, %s49
      %p53 = scmp.eq.s32.totalorder %s13, 0
      %p54 = por %p52, %p53
      %p55 = scmp.ne.s32.totalorder %s47, %s49
      %p56 = scmp.eq.s32.totalorder %s18, 1
      %p57 = por %p55, %p56
      %p58 = scmp.ne.s32.totalorder %s49, %s50
      %p59 = scmp.eq.s32.totalorder %s18, 0
      %p60 = por %p58, %p59
      %p61 = scmp.ne.s32.totalorder %s49, %s50
      %p62 = scmp.eq.s32.totalorder %s19, 1
      %p63 = por %p61, %p62
      %p65 = scmp.ne.s32.totalorder %s50, %s64
      %p66 = scmp.eq.s32.totalorder %s19, 0
      %p67 = por %p65, %p66
      %s69 = sadd.s32 %s68, 1
      %p72 = scmp.eq.s32.totalorder %s13, 1
      %p73 = scmp.ne.s32.totalorder %s68, %s70
      %p74 = scmp.eq.s32.totalorder %s13, 0
      %p75 = por %p73, %p74
      %p76 = scmp.ne.s32.totalorder %s68, %s70
      %p77 = scmp.eq.s32.totalorder %s18, 1
      %p78 = por %p76, %p77
      %p79 = scmp.ne.s32.totalorder %s70, %s71
      %p80 = scmp.eq.s32.totalorder %s18, 0
      %p81 = por %p79, %p80
      %p82 = scmp.ne.s32.totalorder %s70, %s71
      %p83 = scmp.eq.s32.totalorder %s19, 1
      %p84 = por %p82, %p83
      %p86 = scmp.ne.s32.totalorder %s71, %s85
      %p87 = scmp.eq.s32.totalorder %s19, 0
      %p88 = por %p86, %p87
      %s90 = sadd.s32 %s89, 1
      %p93 = scmp.eq.s32.totalorder %s13, 1
      %p94 = scmp.ne.s32.totalorder %s89, %s91
      %p95 = scmp.eq.s32.totalorder %s13, 0
      %p96 = por %p94, %p95
      %p97 = scmp.ne.s32.totalorder %s89, %s91
      %p98 = scmp.eq.s32.totalorder %s18, 1
      %p99 = por %p97, %p98
      %p100 = scmp.ne.s32.totalorder %s91, %s92
      %p101 = scmp.eq.s32.totalorder %s18, 0
      %p102 = por %p100, %p101
      %p103 = scmp.ne.s32.totalorder %s91, %s92
      %p104 = scmp.eq.s32.totalorder %s19, 1
      %p105 = por %p103, %p104
      %p107 = scmp.ne.s32.totalorder %s92, %s106
      %p108 = scmp.eq.s32.totalorder %s19, 0
      %p109 = por %p107, %p108
      %s110 = ssub.s32 %s13, %s20
      %p111 = scmp.eq.s32.totalorder %s110, 0
      %s113 = sadd.s32 %s112, 1
      %s114 = scalar_select %p111, %s112, %s113
      %p117 = pneg %p111
      %p118 = scmp.eq.s32.totalorder %s13, 1
      %p119 = por %p117, %p118
      %p120 = scmp.ne.s32.totalorder %s112, %s115
      %p121 = scmp.eq.s32.totalorder %s13, 0
      %p122 = por %p120, %p121
      %p123 = scmp.ne.s32.totalorder %s112, %s115
      %p124 = scmp.eq.s32.totalorder %s18, 1
      %p125 = por %p123, %p124
      %p126 = scmp.ne.s32.totalorder %s115, %s116
      %p127 = scmp.eq.s32.totalorder %s18, 0
      %p128 = por %p126, %p127
      %p129 = scmp.ne.s32.totalorder %s115, %s116
      %p130 = scmp.eq.s32.totalorder %s19, 1
      %p131 = por %p129, %p130
      %p133 = scmp.ne.s32.totalorder %s116, %s132
      %p134 = scmp.eq.s32.totalorder %s19, 0
      %p135 = por %p133, %p134
      %p136 = scmp.le.s32.totalorder 1, %s13
      %p137 = scmp.lt.s32.totalorder %s13, 3
      %p138 = pnand %p136, %p137
      %p139 = pneg %p138
      // Predicated region
      $region9: #{tpu_custom_call.1} parent=5 // pred_check
        _
      $region10: #{tpu_custom_call.1} parent=5 // pred_check_branch
        %141 = sbr.rel (%p138) target = $region12
      $region11: #{tpu_custom_call.1} parent=5 // pred_region
        %s142 = ssub.s32 %s13, 1
        // Predicated region
        $region13: #{tpu_custom_call.1} parent=11 // pred_check
          %p143 = pneg %p60
        $region14: #{tpu_custom_call.1} parent=11 // pred_check_branch
          %145 = sbr.rel (%p143) target = $region16
        $region15: #{tpu_custom_call.1} parent=11 // pred_region
          _
        $region16: #{tpu_custom_call.1} parent=11 // pred_fallthru
          _
        // Predicated region
        $region17: #{tpu_custom_call.1} parent=11 // pred_check
          %p146 = pneg %p81
        $region18: #{tpu_custom_call.1} parent=11 // pred_check_branch
          %148 = sbr.rel (%p146) target = $region20
        $region19: #{tpu_custom_call.1} parent=11 // pred_region
          _
        $region20: #{tpu_custom_call.1} parent=11 // pred_fallthru
          _
        // Predicated region
        $region21: #{tpu_custom_call.1} parent=11 // pred_check
          %p149 = pneg %p102
        $region22: #{tpu_custom_call.1} parent=11 // pred_check_branch
          %151 = sbr.rel (%p149) target = $region24
        $region23: #{tpu_custom_call.1} parent=11 // pred_region
          _
        $region24: #{tpu_custom_call.1} parent=11 // pred_fallthru
          _
      $region12: #{tpu_custom_call.1} parent=5 // pred_fallthru
        _
      %p152 = scmp.lt.s32.totalorder %s13, 2
      // Predicated region
      $region25: #{tpu_custom_call.1} parent=5 // pred_check
        %p153 = pneg %p152
      $region26: #{tpu_custom_call.1} parent=5 // pred_check_branch
        %155 = sbr.rel (%p153) target = $region28
      $region27: #{tpu_custom_call.1} parent=5 // pred_region
        // Predicated region
        $region29: #{tpu_custom_call.1} parent=27 // pred_check
          %p156 = pneg %p33
        $region30: #{tpu_custom_call.1} parent=27 // pred_check_branch
          %158 = sbr.rel (%p156) target = $region32
        $region31: #{tpu_custom_call.1} parent=27 // pred_region
          %p159 = scmp.lt.s32.totalorder %s13, 1
          %s160 = scalar_select %p159, %s13, 1
          %s161 = smul.addr %s160, 2
          %s162 = smul.addr %s161, 4
          %s163 = scalar_lea.vmem %s0, %s162
        $region32: #{tpu_custom_call.1} parent=27 // pred_fallthru
          _
      $region28: #{tpu_custom_call.1} parent=5 // pred_fallthru
        _
      %p164 = scmp.le.s32.totalorder 1, %s13
      %p165 = scmp.lt.s32.totalorder %s13, 3
      %p166 = pnand %p164, %p165
      %p167 = pneg %p166
      // Predicated region
      $region33: #{tpu_custom_call.1} parent=5 // pred_check
        _
      $region34: #{tpu_custom_call.1} parent=5 // pred_check_branch
        %169 = sbr.rel (%p166) target = $region36
      $region35: #{tpu_custom_call.1} parent=5 // pred_region
        %s170 = ssub.s32 %s13, 1
        %p171 = scmp.lt.s32.totalorder %s18, 1
        %s172 = scalar_select %p171, %s18, 1
        %s173 = smul.addr %s172, 2
        %s174 = smul.addr %s173, 4
        %s175 = scalar_lea.vmem %s0, %s174
        %p176 = pneg %p39
        %p177 = pneg %p36
        %p178 = pneg %p60
        %p179 = pneg %p57
        %p180 = pneg %p81
        %p181 = pneg %p78
        %p182 = pneg %p102
        %p183 = pneg %p99
        %p184 = pneg %p128
        %p185 = pneg %p125
        %s186 = sand.u32 %s115, 1
        %s187 = scalar_lea.sflag [#allocation4], %s186
        %s188 = sand.u32 %s115, 1
        %s189 = smul.addr %s188, 8
        %s190 = scalar_lea.vmem [#allocation3], %s189
        %p191 = scmp.lt.s32.totalorder %s18, 1
        %s192 = scalar_select %p191, %s18, 1
        %s193 = smul.addr %s192, 2
        %s194 = smul.addr %s193, 4
        %s195 = scalar_lea.vmem %s0, %s194
        %v196 = vld [vmem:[%s195] sm:$0xff]
        %198 = vst [vmem:[#allocation1] ss:$2 sm:$0xff] %v196
        %v199 = vld.sshfl [vmem:[#allocation1] sm:$0xff pattern:$0x75316420]
        %v200 = vld.sshfl [vmem:[#allocation1 + $0x8] sm:$0xff pattern:$0x75316420]
        %203 = vst [vmem:[#allocation2] sm:$0xf] %v199
        %vm204 = vcmask 764928
        %205 = vst.msk [vmem:[#allocation2 + $0x8] sm:$0xf] %vm204, %v200
        %v206 = vld [vmem:[%s195] sm:$0xff]
        %s208 = scalar_lea.vmem [#allocation1], 1
        %209 = vst [vmem:[%s208] ss:$2 sm:$0xff] %v206
        %v210 = vld.sshfl [vmem:[#allocation1] sm:$0xff pattern:$0x75316420]
        %v211 = vld.sshfl [vmem:[#allocation1 + $0x8] sm:$0xff pattern:$0x75316420]
        %212 = vrot.lane.b32.xlu0 %v210, 127
        %v213 = vpop.permute.xlu0 %212
        %214 = vrot.lane.b32.xlu0 %v211, 127
        %v215 = vpop.permute.xlu0 %214
        %vm216 = vcmask 1039360
        %v217 = vsel %vm216, %v213, %v215
        %220 = vst [vmem:[#allocation2] sm:$0xf0] %v217
        %vm221 = vcmask 769028
        %222 = vst.msk [vmem:[#allocation2 + $0x8] sm:$0xf0] %vm221, %v215
        %v223 = vld [vmem:[%s195] sm:$0xff]
        %225 = vst [vmem:[#allocation1] ss:$2 sm:$0xff] %v223
        %v226 = vld.sshfl [vmem:[#allocation1] sm:$0xff pattern:$0x75316420]
        %v227 = vld.sshfl [vmem:[#allocation1 + $0x8] sm:$0xff pattern:$0x75316420]
        %228 = vrot.lane.b32.xlu0 %v226, 126
        %v229 = vpop.permute.xlu0 %228
        %230 = vrot.lane.b32.xlu0 %v227, 126
        %v231 = vpop.permute.xlu0 %230
        %vm232 = vcmask 1031168
        %v233 = vsel %vm232, %v229, %v231
        %236 = vst [vmem:[#allocation2 + $0x10] sm:$0xf] %v233
        %237 = vst.msk [vmem:[#allocation2 + $0x18] sm:$0xf] %vm204, %v231
        %v238 = vld [vmem:[%s195] sm:$0xff]
        %s240 = scalar_lea.vmem [#allocation1], 1
        %241 = vst [vmem:[%s240] ss:$2 sm:$0xff] %v238
        %v242 = vld.sshfl [vmem:[#allocation1] sm:$0xff pattern:$0x75316420]
        %v243 = vld.sshfl [vmem:[#allocation1 + $0x8] sm:$0xff pattern:$0x75316420]
        %244 = vrot.lane.b32.xlu0 %v242, 112
        %v245 = vpop.permute.xlu0 %244
        %246 = vrot.lane.b32.xlu0 %v243, 112
        %v247 = vpop.permute.xlu0 %246
        %vm248 = vcmask 916480
        %v249 = vsel %vm248, %v245, %v247
        %252 = vst [vmem:[#allocation2 + $0x10] sm:$0xf0] %v249
        %253 = vst.msk [vmem:[#allocation2 + $0x18] sm:$0xf0] %vm221, %v247
        %v254 = vld [vmem:[%s195] sm:$0xff]
        %256 = vst [vmem:[#allocation1] ss:$2 sm:$0xff] %v254
        %v257 = vld.sshfl [vmem:[#allocation1] sm:$0xff pattern:$0x75316420]
        %v258 = vld.sshfl [vmem:[#allocation1 + $0x8] sm:$0xff pattern:$0x75316420]
        %259 = vrot.lane.b32.xlu0 %v257, 111
        %v260 = vpop.permute.xlu0 %259
        %261 = vrot.lane.b32.xlu0 %v258, 111
        %v262 = vpop.permute.xlu0 %261
        %vm263 = vcmask 908288
        %v264 = vsel %vm263, %v260, %v262
        %267 = vst [vmem:[#allocation2 + $0x20] sm:$0xf] %v264
        %268 = vst.msk [vmem:[#allocation2 + $0x28] sm:$0xf] %vm204, %v262
        %v269 = vld [vmem:[%s195] sm:$0xff]
        %s271 = scalar_lea.vmem [#allocation1], 1
        %272 = vst [vmem:[%s271] ss:$2 sm:$0xff] %v269
        %v273 = vld.sshfl [vmem:[#allocation1] sm:$0xff pattern:$0x75316420]
        %v274 = vld.sshfl [vmem:[#allocation1 + $0x8] sm:$0xff pattern:$0x75316420]
        %275 = vrot.lane.b32.xlu0 %v273, 110
        %v276 = vpop.permute.xlu0 %275
        %277 = vrot.lane.b32.xlu0 %v274, 110
        %v278 = vpop.permute.xlu0 %277
        %vm279 = vcmask 900096
        %v280 = vsel %vm279, %v276, %v278
        %283 = vst [vmem:[#allocation2 + $0x20] sm:$0xf0] %v280
        %284 = vst.msk [vmem:[#allocation2 + $0x28] sm:$0xf0] %vm221, %v278
        %v285 = vld [vmem:[%s195] sm:$0xff]
        %287 = vst [vmem:[#allocation1] ss:$2 sm:$0xff] %v285
        %v288 = vld.sshfl [vmem:[#allocation1] sm:$0xff pattern:$0x75316420]
        %v289 = vld.sshfl [vmem:[#allocation1 + $0x8] sm:$0xff pattern:$0x75316420]
        %290 = vrot.lane.b32.xlu0 %v288, 96
        %v291 = vpop.permute.xlu0 %290
        %292 = vrot.lane.b32.xlu0 %v289, 96
        %v293 = vpop.permute.xlu0 %292
        %vm294 = vcmask 785408
        %v295 = vsel %vm294, %v291, %v293
        %298 = vst [vmem:[#allocation2 + $0x30] sm:$0xf] %v295
        %299 = vst.msk [vmem:[#allocation2 + $0x38] sm:$0xf] %vm204, %v293
        %v300 = vld [vmem:[%s195] sm:$0xff]
        %s302 = scalar_lea.vmem [#allocation1], 1
        %303 = vst [vmem:[%s302] ss:$2 sm:$0xff] %v300
        %v304 = vld.sshfl [vmem:[#allocation1] sm:$0xff pattern:$0x75316420]
        %v305 = vld.sshfl [vmem:[#allocation1 + $0x8] sm:$0xff pattern:$0x75316420]
        %306 = vrot.lane.b32.xlu0 %v304, 95
        %v307 = vpop.permute.xlu0 %306
        %308 = vrot.lane.b32.xlu0 %v305, 95
        %v309 = vpop.permute.xlu0 %308
        %vm310 = vcmask 777216
        %v311 = vsel %vm310, %v307, %v309
        %314 = vst [vmem:[#allocation2 + $0x30] sm:$0xf0] %v311
        %315 = vst.msk [vmem:[#allocation2 + $0x38] sm:$0xf0] %vm221, %v309
        %v316 = vld [vmem:[%s195] sm:$0xff]
        %318 = vst [vmem:[#allocation1] ss:$2 sm:$0xff] %v316
        %v319 = vld.sshfl [vmem:[#allocation1] sm:$0xff pattern:$0x75316420]
        %v320 = vld.sshfl [vmem:[#allocation1 + $0x8] sm:$0xff pattern:$0x75316420]
        %321 = vrot.lane.b32.xlu0 %v319, 94
        %v322 = vpop.permute.xlu0 %321
        %323 = vrot.lane.b32.xlu0 %v320, 94
        %v324 = vpop.permute.xlu0 %323
        %vm325 = vcmask 769024
        %v326 = vsel %vm325, %v322, %v324
        %329 = vst [vmem:[#allocation2 + $0x40] sm:$0xf] %v326
        %330 = vst.msk [vmem:[#allocation2 + $0x48] sm:$0xf] %vm204, %v324
        %v331 = vld [vmem:[%s1] sm:$0xff]
        %v332 = vld [vmem:[%s3] sm:$0xff]
        %v333 = vld [vmem:[%s3 + $0x8] sm:$0xff]
        %v334 = vld [vmem:[%s3 + $0x10] sm:$0xff]
        %v335 = vld [vmem:[%s3 + $0x18] sm:$0xff]
        %v336 = vld [vmem:[%s3 + $0x20] sm:$0xff]
        %v337 = vld [vmem:[%s3 + $0x28] sm:$0xff]
        %v338 = vld [vmem:[%s3 + $0x30] sm:$0xff]
        %v339 = vld [vmem:[%s3 + $0x38] sm:$0xff]
        %v340 = vld [vmem:[%s3 + $0x40] sm:$0xff]
        %v341 = vld [vmem:[%s3 + $0x48] sm:$0xff]
        %v342 = vld [vmem:[%s3 + $0x50] sm:$0xff]
        %v343 = vld [vmem:[%s3 + $0x58] sm:$0xff]
        %v344 = vld [vmem:[%s3 + $0x60] sm:$0xff]
        %v345 = vld [vmem:[%s3 + $0x68] sm:$0xff]
        %v346 = vld [vmem:[%s3 + $0x70] sm:$0xff]
        %v347 = vld [vmem:[%s3 + $0x78] sm:$0xff]
        %v348 = vld [vmem:[%s3 + $0x80] sm:$0xff]
        %v349 = vld [vmem:[%s3 + $0x88] sm:$0xff]
        %v350 = vld [vmem:[%s3 + $0x90] sm:$0xff]
        %v351 = vld [vmem:[%s3 + $0x98] sm:$0xff]
        %v352 = vld [vmem:[%s3 + $0xa0] sm:$0xff]
        %v353 = vld [vmem:[%s3 + $0xa8] sm:$0xff]
        %v354 = vld [vmem:[%s3 + $0xb0] sm:$0xff]
        %v355 = vld [vmem:[%s3 + $0xb8] sm:$0xff]
        %v356 = vld [vmem:[%s3 + $0xc0] sm:$0xff]
        %v357 = vld [vmem:[%s3 + $0xc8] sm:$0x1f]
        %v358 = vld [vmem:[%s2] sm:$0xff]
        %v359 = vld [vmem:[#allocation2] sm:$0xff]
        %v360 = vld [vmem:[#allocation2 + $0x8] sm:$0xff]
        %v361 = vld [vmem:[#allocation2 + $0x10] sm:$0xff]
        %v362 = vld [vmem:[#allocation2 + $0x18] sm:$0xff]
        %v363 = vld [vmem:[#allocation2 + $0x20] sm:$0xff]
        %v364 = vld [vmem:[#allocation2 + $0x28] sm:$0xff]
        %v365 = vld [vmem:[#allocation2 + $0x30] sm:$0xff]
        %v366 = vld [vmem:[#allocation2 + $0x38] sm:$0xff]
        %v367 = vld [vmem:[#allocation2 + $0x40] sm:$0xf]
        %v368 = vld [vmem:[#allocation2 + $0x48] sm:$0xf]
        %vm369 = vcmask 293888
        %v371 = vsel %vm369, %v331, 0
        %vm373 = vcmask 1043456
        %v375 = vsel %vm373, %v367, 0
        %v378 = vsel %vm373, %v368, 0
        %380 = vmatpush.msra.mxu0 0.0
        %381 = vmatpush.msra.mxu0 0.0
        %382 = vmatpush.msra.mxu0 0.0
        %383 = vmatpush.msra.mxu0 0.0
        %384 = vmatpush.msra.mxu0 0.0
        %385 = vmatpush.msra.mxu0 0.0
        %386 = vmatpush.msra.mxu0 0.0
        %387 = vmatpush.msra.mxu0 0.0
        %388 = vmatpush.msra.mxu0 0.0
        %389 = vmatpush.msra.mxu0 0.0
        %390 = vmatpush.msra.mxu0 0.0
        %391 = vmatpush.msra.mxu0 %v375
        %392 = vmatpush.msra.mxu0 %v365
        %393 = vmatpush.msra.mxu0 %v363
        %394 = vmatpush.msra.mxu0 %v361
        %395 = vmatpush.msra.mxu0 %v359
        %396 = vmatmul.f32.gmra.mxu0 %v371
        %v397 = vpop.f32.mrf.mxu0
        %v398 = vadd.f32 0.0, %v397
        %399 = vdwg.mxu0
        %400 = vmatpush.msra.mxu0 0.0
        %401 = vmatpush.msra.mxu0 0.0
        %402 = vmatpush.msra.mxu0 0.0
        %403 = vmatpush.msra.mxu0 0.0
        %404 = vmatpush.msra.mxu0 0.0
        %405 = vmatpush.msra.mxu0 0.0
        %406 = vmatpush.msra.mxu0 0.0
        %407 = vmatpush.msra.mxu0 0.0
        %408 = vmatpush.msra.mxu0 0.0
        %409 = vmatpush.msra.mxu0 0.0
        %410 = vmatpush.msra.mxu0 0.0
        %411 = vmatpush.msra.mxu0 %v378
        %412 = vmatpush.msra.mxu0 %v366
        %413 = vmatpush.msra.mxu0 %v364
        %414 = vmatpush.msra.mxu0 %v362
        %415 = vmatpush.msra.mxu0 %v360
        %416 = vmatmul.f32.gmra.mxu0 %v371
        %v417 = vpop.f32.mrf.mxu0
        %v418 = vadd.f32 0.0, %v417
        %419 = vdwg.mxu0
        %422 = vrot.lane.b32.xlu0 %v398, 112
        %v423 = vpop.permute.xlu0 %422
        %424 = vrot.lane.b32.xlu0 %v418, 112
        %v425 = vpop.permute.xlu0 %424
        %v426 = vsel %vm248, %v423, %v425
        %v429 = vmax.f32 %v398, %v426
        %v430 = vmax.f32 %v418, %v425
        %433 = vrot.lane.b32.xlu0 %v429, 127
        %v434 = vpop.permute.xlu0 %433
        %435 = vrot.lane.b32.xlu0 %v430, 127
        %v436 = vpop.permute.xlu0 %435
        %v437 = vsel %vm216, %v434, %v436
        %v440 = vmax.f32 %v429, %v437
        %v441 = vmax.f32 %v430, %v436
        %443 = vset.pattern.permute.xlu0 0
        %444 = vperm.xlu0 %443, %v358
        %v445 = vpop.permute.xlu0 %444
        %vm447 = vcmask 629760
        %v449 = vsel %vm447, %v441, 0
        %vm451 = vcmask 1044480
        %v453 = vsel %vm451, %v357, 0
        %455 = vmatpush.msra.mxu0 %v347
        %456 = vmatpush.msra.mxu0 %v346
        %457 = vmatpush.msra.mxu0 %v345
        %458 = vmatpush.msra.mxu0 %v344
        %459 = vmatpush.msra.mxu0 %v343
        %460 = vmatpush.msra.mxu0 %v342
        %461 = vmatpush.msra.mxu0 %v341
        %462 = vmatpush.msra.mxu0 %v340
        %463 = vmatpush.msra.mxu0 %v339
        %464 = vmatpush.msra.mxu0 %v338
        %465 = vmatpush.msra.mxu0 %v337
        %466 = vmatpush.msra.mxu0 %v336
        %467 = vmatpush.msra.mxu0 %v335
        %468 = vmatpush.msra.mxu0 %v334
        %469 = vmatpush.msra.mxu0 %v333
        %470 = vmatpush.msra.mxu0 %v332
        %471 = vmatmul.f32.gmra.mxu0 %v440
        %v472 = vpop.f32.mrf.mxu0
        %v473 = vadd.f32 %v445, %v472
        %474 = vdwg.mxu0
        %475 = vmatpush.msra.mxu0 0.0
        %476 = vmatpush.msra.mxu0 0.0
        %477 = vmatpush.msra.mxu0 0.0
        %478 = vmatpush.msra.mxu0 0.0
        %479 = vmatpush.msra.mxu0 0.0
        %480 = vmatpush.msra.mxu0 0.0
        %481 = vmatpush.msra.mxu0 %v453
        %482 = vmatpush.msra.mxu0 %v356
        %483 = vmatpush.msra.mxu0 %v355
        %484 = vmatpush.msra.mxu0 %v354
        %485 = vmatpush.msra.mxu0 %v353
        %486 = vmatpush.msra.mxu0 %v352
        %487 = vmatpush.msra.mxu0 %v351
        %488 = vmatpush.msra.mxu0 %v350
        %489 = vmatpush.msra.mxu0 %v349
        %490 = vmatpush.msra.mxu0 %v348
        %491 = vmatmul.f32.gmra.mxu0 %v449
        %v492 = vpop.f32.mrf.mxu0
        %v493 = vadd.f32 %v473, %v492
        %494 = vdwg.mxu0
        %v495 = vmax.f32 %v493, 0.0
        %vm496 = vcmask 400384
        %497 = vst.msk [vmem:[%s190] sm:$0xff] %vm496, %v495
        %s498 = sand.u32 %s115, 1
        %s499 = scalar_lea.sflag [#allocation4], %s498
        %s500 = sand.u32 %s115, 1
        %s501 = smul.addr %s500, 8
        %s502 = scalar_lea.vmem [#allocation3], %s501
        // Predicated region
        $region37: #{tpu_custom_call.1} parent=35 // pred_check
          %p503 = pneg %p125
        $region38: #{tpu_custom_call.1} parent=35 // pred_check_branch
          %505 = sbr.rel (%p503) target = $region40
        $region39: #{tpu_custom_call.1} parent=35 // pred_region
          %507 = vsyncadd %s499, 0
          %s508 = smul.addr %s18, 8
          %s509 = scalar_lea.hbm %s4, %s508
          %s511 = sshll.u32 %s502, 4
          %s512 = int_to_ptr.vmem [resolvable:$true] %s511
          %s513 = sshll.u32 %s509, 4
          %s514 = int_to_ptr.hbm [resolvable:$true] %s513
          %516 = dma.vmem_to_hbm [thread:$0]  %s512, 128, %s514, %s499
        $region40: #{tpu_custom_call.1} parent=35 // pred_fallthru
          _
      $region36: #{tpu_custom_call.1} parent=5 // pred_fallthru
        _
      %p517 = scmp.le.s32.totalorder 2, %s13
      // Predicated region
      $region41: #{tpu_custom_call.1} parent=5 // pred_check
        %p518 = pneg %p517
      $region42: #{tpu_custom_call.1} parent=5 // pred_check_branch
        %520 = sbr.rel (%p518) target = $region44
      $region43: #{tpu_custom_call.1} parent=5 // pred_region
        %s521 = ssub.s32 %s13, 2
        // Predicated region
        $region45: #{tpu_custom_call.1} parent=43 // pred_check
          %p522 = pneg %p131
        $region46: #{tpu_custom_call.1} parent=43 // pred_check_branch
          %524 = sbr.rel (%p522) target = $region48
        $region47: #{tpu_custom_call.1} parent=43 // pred_region
          %s525 = sand.u32 %s116, 1
          %s526 = scalar_lea.sflag [#allocation4], %s525
          %s527 = sand.u32 %s116, 1
          %s528 = smul.addr %s527, 8
          %s529 = scalar_lea.vmem [#allocation3], %s528
          %531 = dma.done %s526, 128
        $region48: #{tpu_custom_call.1} parent=43 // pred_fallthru
          _
      $region44: #{tpu_custom_call.1} parent=5 // pred_fallthru
        _
    $region6: #{tpu_custom_call.1} parent=1 // loop_footer
      %s17 = sadd.s32 1, %s13
    $region7: #{tpu_custom_call.1} parent=1 // loop_footer_branch
      %12 = sbr.rel target = $region3
    $region8: #{tpu_custom_call.1} parent=1 // loop_exit
      _
    %532 = vsyncpa [#allocation4], 1
    %s533 = scalar_lea.sflag [#allocation4], 1
    %534 = vsyncpa %s533, 1

</llo_original>
